<compile_context>
chip_gen: v7x
topology: tpu7x:2x2x1
jax: 0.10.0
libtpu: 0.0.40
codegen_flags: <defaults>
</compile_context>

<pallas_src>
import jax
import jax.numpy as jnp
from jax.experimental import pallas as pl
from jax.experimental.pallas import tpu as pltpu


def stn_kernel(x_ref, w1_ref, b1_ref, w2_ref, b2_ref, w3_ref, b3_ref, out_ref):
    # fc1: (TB, in) @ (in, 128) -> +bias -> ReLU   (accumulate in f32)
    y = jnp.dot(x_ref[...], w1_ref[...], preferred_element_type=jnp.float32)
    y = jnp.maximum(y + b1_ref[...], 0.0)
    # fc2: (TB, 128) @ (128, 64) -> +bias -> ReLU
    y = jnp.dot(y.astype(w2_ref.dtype), w2_ref[...],
                preferred_element_type=jnp.float32)
    y = jnp.maximum(y + b2_ref[...], 0.0)
    # fc3 (columns zero-padded to a lane-dense width): (TB, 64) @ (64, out_pad)
    out = jnp.dot(y.astype(w3_ref.dtype), w3_ref[...],
                  preferred_element_type=jnp.float32)
    out_ref[...] = out + b3_ref[...]   # full-width, unmasked store


def init_linear(key, in_features, out_features):
    """PyTorch-default-style uniform init, returned already transposed (in, out)."""
    kw, kb = jax.random.split(key)
    bound = 1.0 / jnp.sqrt(jnp.float32(in_features))
    w_t = jax.random.uniform(kw, (in_features, out_features), jnp.float32, -bound, bound)
    b = jax.random.uniform(kb, (1, out_features), jnp.float32, -bound, bound)
    return w_t, b


def make_params(key, input_dim, num_classes):
    # Classifier branch only: the localization branch is dead code w.r.t. the
    # module's return value and is intentionally not materialized.
    k1, k2, k3 = jax.random.split(key, 3)
    w1, b1 = init_linear(k1, input_dim, 128)
    w2, b2 = init_linear(k2, 128, 64)
    w3, b3 = init_linear(k3, 64, num_classes)
    return (w1, b1, w2, b2, w3, b3)


def stn_forward(x, params, *, tb=512, compute_dtype=jnp.float32):
    w1, b1, w2, b2, w3, b3 = params
    batch, input_dim = x.shape
    num_classes = w3.shape[1]
    out_pad = ((num_classes + 127) // 128) * 128   # lane-dense output width

    # fc3 padded to out_pad columns (zeros) -> result slab is lane-dense.
    w3p = jnp.zeros((w3.shape[0], out_pad), w3.dtype).at[:, :num_classes].set(w3)
    b3p = jnp.zeros((1, out_pad), b3.dtype).at[:, :num_classes].set(b3)

    # Batch tiling: whole array if small, otherwise TB-row tiles (rows padded).
    if batch <= tb:
        tb_eff, padded = batch, batch
    else:
        tb_eff = tb
        padded = ((batch + tb - 1) // tb) * tb
    if padded != batch:
        x = jnp.pad(x, ((0, padded - batch), (0, 0)))
    grid = (padded // tb_eff,)

    # Optional bf16 MXU path (v6e/v7x): cast x + weights, keep f32 accumulation.
    cdt = jnp.dtype(compute_dtype)
    xk = x.astype(cdt)
    w1k, w2k, w3k = w1.astype(cdt), w2.astype(cdt), w3p.astype(cdt)

    weight_bytes = sum(int(a.size) * a.dtype.itemsize
                       for a in (w1k, b1, w2k, b2, w3k, b3p))
    flops = 2 * padded * (input_dim * w1.shape[1]
                          + w1.shape[1] * w2.shape[1]
                          + w2.shape[1] * out_pad)
    bytes_accessed = (padded * input_dim * cdt.itemsize
                      + weight_bytes
                      + padded * out_pad * 4)

    def resident(shape):
        # Weights/biases: same block every grid step -> stay VMEM-resident.
        return pl.BlockSpec(shape, lambda i: (0, 0))

    out_padded = pl.pallas_call(
        stn_kernel,
        out_shape=jax.ShapeDtypeStruct((padded, out_pad), jnp.float32),
        grid=grid,
        in_specs=[
            pl.BlockSpec((tb_eff, input_dim), lambda i: (i, 0)),   # x: batch-tiled
            resident(w1k.shape), resident(b1.shape),
            resident(w2k.shape), resident(b2.shape),
            resident(w3k.shape), resident(b3p.shape),
        ],
        out_specs=pl.BlockSpec((tb_eff, out_pad), lambda i: (i, 0)),
        compiler_params=pltpu.CompilerParams(
            dimension_semantics=("parallel",),        # megacore-shardable batch axis
            vmem_limit_bytes=32 * 1024 * 1024,        # safe on v5e/v6e (128 MiB) and v7x (64 MiB)
        ),
        cost_estimate=pl.CostEstimate(
            flops=flops, transcendentals=0, bytes_accessed=bytes_accessed),
    )(xk, w1k, b1, w2k, b2, w3k, b3p)

    # Strip row padding and the zero-padded output columns.
    return out_padded[:batch, :num_classes]


def _reference(x, params):
    w1, b1, w2, b2, w3, b3 = params
    y = jnp.maximum(x @ w1 + b1, 0.0)
    y = jnp.maximum(y @ w2 + b2, 0.0)
    return y @ w3 + b3


if __name__ == "__main__":
    key = jax.random.PRNGKey(0)
    k_x1, k_x2, k_p = jax.random.split(key, 3)

    input_dim = 16
    num_classes = 4
    params = make_params(k_p, input_dim, num_classes)

    # Small batch: single whole-array block (grid of 1).
    x_small = jax.random.normal(k_x1, (8, input_dim), jnp.float32)
    out_small = stn_forward(x_small, params)
    jax.block_until_ready(out_small)
    assert out_small.shape == (8, num_classes)
    assert jnp.allclose(out_small, _reference(x_small, params), atol=1e-5, rtol=1e-5)

    # Larger, non-multiple-of-tile batch: exercises the batch grid + row padding.
    x_big = jax.random.normal(k_x2, (600, input_dim), jnp.float32)
    out_big = stn_forward(x_big, params, tb=512)
    jax.block_until_ready(out_big)
    assert out_big.shape == (600, num_classes)
    assert jnp.allclose(out_big, _reference(x_big, params), atol=1e-5, rtol=1e-5)

    # bf16 MXU path (v6e/v7x-oriented), f32 accumulation -> looser tolerance.
    out_bf16 = stn_forward(x_big, params, tb=512, compute_dtype=jnp.bfloat16)
    jax.block_until_ready(out_bf16)
    assert out_bf16.shape == (600, num_classes)
    assert jnp.allclose(out_bf16, _reference(x_big, params), atol=1e-1, rtol=1e-1)

    print("KERNEL_OK")
</pallas_src>

<mosaic_0001>
module attributes {stable_mosaic.version = 11 : i64} {
  func.func @stn_kernel(%arg0: i32, %arg1: memref<8x16xf32, #tpu.memory_space<vmem>>, %arg2: memref<16x128xf32, #tpu.memory_space<vmem>>, %arg3: memref<1x128xf32, #tpu.memory_space<vmem>>, %arg4: memref<128x64xf32, #tpu.memory_space<vmem>>, %arg5: memref<1x64xf32, #tpu.memory_space<vmem>>, %arg6: memref<64x128xf32, #tpu.memory_space<vmem>>, %arg7: memref<1x128xf32, #tpu.memory_space<vmem>>, %arg8: memref<8x128xf32, #tpu.memory_space<vmem>>) attributes {dimension_semantics = [#tpu.dimension_semantics<parallel>], iteration_bounds = array<i64: 1>, scalar_prefetch = 0 : i64, scratch_operands = 0 : i64, tpu.core_type = #tpu.core_type<tc>, window_params = [{transform_indices = @transform_0, window_bounds = array<i64: 8, 16>}, {pipeline_mode = #tpu.pipeline_mode<synchronous>, transform_indices = @transform_1, window_bounds = array<i64: 16, 128>}, {pipeline_mode = #tpu.pipeline_mode<synchronous>, transform_indices = @transform_2, window_bounds = array<i64: 1, 128>}, {pipeline_mode = #tpu.pipeline_mode<synchronous>, transform_indices = @transform_3, window_bounds = array<i64: 128, 64>}, {pipeline_mode = #tpu.pipeline_mode<synchronous>, transform_indices = @transform_4, window_bounds = array<i64: 1, 64>}, {pipeline_mode = #tpu.pipeline_mode<synchronous>, transform_indices = @transform_5, window_bounds = array<i64: 64, 128>}, {pipeline_mode = #tpu.pipeline_mode<synchronous>, transform_indices = @transform_6, window_bounds = array<i64: 1, 128>}, {transform_indices = @transform_7, window_bounds = array<i64: 8, 128>}]} {
    %c0 = arith.constant 0 : index
    %c0_0 = arith.constant 0 : index
    %0 = vector.load %arg1[%c0, %c0_0] : memref<8x16xf32, #tpu.memory_space<vmem>>, vector<8x16xf32>
    %c0_1 = arith.constant 0 : index
    %c0_2 = arith.constant 0 : index
    %1 = vector.load %arg2[%c0_1, %c0_2] : memref<16x128xf32, #tpu.memory_space<vmem>>, vector<16x128xf32>
    %cst = arith.constant dense<0.000000e+00> : vector<8x128xf32>
    %2 = tpu.matmul %0, %1, %cst {dimension_numbers = #tpu.dot_dimension_numbers<[1], [0], [0], [1], [0, 0, 1, 1], [], []>} : vector<8x16xf32>, vector<16x128xf32>, vector<8x128xf32> -> vector<8x128xf32>
    %c0_3 = arith.constant 0 : index
    %c0_4 = arith.constant 0 : index
    %3 = vector.load %arg3[%c0_3, %c0_4] : memref<1x128xf32, #tpu.memory_space<vmem>>, vector<1x128xf32>
    %4 = vector.broadcast %3 : vector<1x128xf32> to vector<8x128xf32>
    %5 = arith.addf %2, %4 : vector<8x128xf32>
    %cst_5 = arith.constant 0.000000e+00 : f32
    %6 = vector.broadcast %cst_5 : f32 to vector<8x128xf32>
    %7 = arith.maximumf %5, %6 : vector<8x128xf32>
    %c0_6 = arith.constant 0 : index
    %c0_7 = arith.constant 0 : index
    %8 = vector.load %arg4[%c0_6, %c0_7] : memref<128x64xf32, #tpu.memory_space<vmem>>, vector<128x64xf32>
    %cst_8 = arith.constant dense<0.000000e+00> : vector<8x64xf32>
    %9 = tpu.matmul %7, %8, %cst_8 {dimension_numbers = #tpu.dot_dimension_numbers<[1], [0], [0], [1], [0, 0, 1, 1], [], []>} : vector<8x128xf32>, vector<128x64xf32>, vector<8x64xf32> -> vector<8x64xf32>
    %c0_9 = arith.constant 0 : index
    %c0_10 = arith.constant 0 : index
    %10 = vector.load %arg5[%c0_9, %c0_10] : memref<1x64xf32, #tpu.memory_space<vmem>>, vector<1x64xf32>
    %11 = vector.broadcast %10 : vector<1x64xf32> to vector<8x64xf32>
    %12 = arith.addf %9, %11 : vector<8x64xf32>
    %cst_11 = arith.constant 0.000000e+00 : f32
    %13 = vector.broadcast %cst_11 : f32 to vector<8x64xf32>
    %14 = arith.maximumf %12, %13 : vector<8x64xf32>
    %c0_12 = arith.constant 0 : index
    %c0_13 = arith.constant 0 : index
    %15 = vector.load %arg6[%c0_12, %c0_13] : memref<64x128xf32, #tpu.memory_space<vmem>>, vector<64x128xf32>
    %cst_14 = arith.constant dense<0.000000e+00> : vector<8x128xf32>
    %16 = tpu.matmul %14, %15, %cst_14 {dimension_numbers = #tpu.dot_dimension_numbers<[1], [0], [0], [1], [0, 0, 1, 1], [], []>} : vector<8x64xf32>, vector<64x128xf32>, vector<8x128xf32> -> vector<8x128xf32>
    %c0_15 = arith.constant 0 : index
    %c0_16 = arith.constant 0 : index
    %17 = vector.load %arg7[%c0_15, %c0_16] : memref<1x128xf32, #tpu.memory_space<vmem>>, vector<1x128xf32>
    %18 = vector.broadcast %17 : vector<1x128xf32> to vector<8x128xf32>
    %19 = arith.addf %16, %18 : vector<8x128xf32>
    %c0_17 = arith.constant 0 : index
    %c0_18 = arith.constant 0 : index
    %20 = vector.load %arg8[%c0_17, %c0_18] : memref<8x128xf32, #tpu.memory_space<vmem>>, vector<8x128xf32>
    tpu.vector_store %arg8[%c0_17, %c0_18], %19 {strides = array<i32>} : memref<8x128xf32, #tpu.memory_space<vmem>>, vector<8x128xf32>,
    return
  }
  func.func @transform_0(%arg0: i32) -> (i32, i32) {
    %c0_i32 = arith.constant 0 : i32
    %c0_i32_0 = arith.constant 0 : i32
    return %arg0, %c0_i32 : i32, i32
  }
  func.func @transform_1(%arg0: i32) -> (i32, i32) {
    %c0_i32 = arith.constant 0 : i32
    %c0_i32_0 = arith.constant 0 : i32
    %c0_i32_1 = arith.constant 0 : i32
    return %c0_i32, %c0_i32_0 : i32, i32
  }
  func.func @transform_2(%arg0: i32) -> (i32, i32) {
    %c0_i32 = arith.constant 0 : i32
    %c0_i32_0 = arith.constant 0 : i32
    %c0_i32_1 = arith.constant 0 : i32
    return %c0_i32, %c0_i32_0 : i32, i32
  }
  func.func @transform_3(%arg0: i32) -> (i32, i32) {
    %c0_i32 = arith.constant 0 : i32
    %c0_i32_0 = arith.constant 0 : i32
    %c0_i32_1 = arith.constant 0 : i32
    return %c0_i32, %c0_i32_0 : i32, i32
  }
  func.func @transform_4(%arg0: i32) -> (i32, i32) {
    %c0_i32 = arith.constant 0 : i32
    %c0_i32_0 = arith.constant 0 : i32
    %c0_i32_1 = arith.constant 0 : i32
    return %c0_i32, %c0_i32_0 : i32, i32
  }
  func.func @transform_5(%arg0: i32) -> (i32, i32) {
    %c0_i32 = arith.constant 0 : i32
    %c0_i32_0 = arith.constant 0 : i32
    %c0_i32_1 = arith.constant 0 : i32
    return %c0_i32, %c0_i32_0 : i32, i32
  }
  func.func @transform_6(%arg0: i32) -> (i32, i32) {
    %c0_i32 = arith.constant 0 : i32
    %c0_i32_0 = arith.constant 0 : i32
    %c0_i32_1 = arith.constant 0 : i32
    return %c0_i32, %c0_i32_0 : i32, i32
  }
  func.func @transform_7(%arg0: i32) -> (i32, i32) {
    %c0_i32 = arith.constant 0 : i32
    %c0_i32_0 = arith.constant 0 : i32
    return %arg0, %c0_i32 : i32, i32
  }
}

</mosaic_0001>

<llo_original>
// kernel: tpu_custom_call.1
$region0: #{tpu_custom_call.1}
  #allocation0 [shape = 'u32[]', space=smem, size = 0x4, offset = 0x4, fixed_abs, tag = 'smem constant byte address 0x4 - core index']
  #allocation1 [shape = 'u32[144,128]{1,0:T(1,128)}', space=vmem, size = 0x12000, scoped, tag = 'internal scratch']
  %s0 = inlined_call_operand.vmem [shape: f32[8,16], index: 0, kind: input, shape index: {}]
  %s1 = inlined_call_operand.vmem [shape: f32[16,128], index: 1, kind: input, shape index: {}]
  %s2 = inlined_call_operand.vmem [shape: f32[1,128], index: 2, kind: input, shape index: {}]
  %s3 = inlined_call_operand.vmem [shape: f32[128,64], index: 3, kind: input, shape index: {}]
  %s4 = inlined_call_operand.vmem [shape: f32[1,64], index: 4, kind: input, shape index: {}]
  %s5 = inlined_call_operand.vmem [shape: f32[64,128], index: 5, kind: input, shape index: {}]
  %s6 = inlined_call_operand.vmem [shape: f32[1,128], index: 6, kind: input, shape index: {}]
  %s7 = inlined_call_operand.hbm [shape: f32[8,128], index: 7, kind: output, shape index: {}]
  %s8 = sld [smem:[#allocation0]]
  $region38: #{tpu_custom_call.1} parent=0
    _
  %s10 = ssub.s32 1, %s8
  %s11 = scalar_select 0, %s10, %s8
  $region1: #{tpu_custom_call.1} parent=0
    #allocation2 [shape = 'u8[4096]{0}', space=vmem, size = 0x1000, scoped, tag = 'output window, operand 0, single buffered']
    #allocation3 [shape = 's32[1]{0}', space=sflag, size = 0x4, scoped, tag = 'scoped memory for tpu_custom_call.1']
    %12 = vsyncpa [#allocation3], 0
    // Predicated region
    $region2: #{tpu_custom_call.1} parent=1 // pred_check
      _
    $region3: #{tpu_custom_call.1} parent=1 // pred_check_branch
      %14 = sbr.rel (0) target = $region5
    $region4: #{tpu_custom_call.1} parent=1 // pred_region
      _
    $region5: #{tpu_custom_call.1} parent=1 // pred_fallthru
      _
    // Predicated region
    $region6: #{tpu_custom_call.1} parent=1 // pred_check
      _
    $region7: #{tpu_custom_call.1} parent=1 // pred_check_branch
      %16 = sbr.rel (0) target = $region9
    $region8: #{tpu_custom_call.1} parent=1 // pred_region
      _
    $region9: #{tpu_custom_call.1} parent=1 // pred_fallthru
      _
    // Predicated region
    $region10: #{tpu_custom_call.1} parent=1 // pred_check
      _
    $region11: #{tpu_custom_call.1} parent=1 // pred_check_branch
      %18 = sbr.rel (0) target = $region13
    $region12: #{tpu_custom_call.1} parent=1 // pred_region
      _
    $region13: #{tpu_custom_call.1} parent=1 // pred_fallthru
      _
    // Predicated region
    $region14: #{tpu_custom_call.1} parent=1 // pred_check
      _
    $region15: #{tpu_custom_call.1} parent=1 // pred_check_branch
      %20 = sbr.rel (0) target = $region17
    $region16: #{tpu_custom_call.1} parent=1 // pred_region
      _
    $region17: #{tpu_custom_call.1} parent=1 // pred_fallthru
      _
    // Predicated region
    $region18: #{tpu_custom_call.1} parent=1 // pred_check
      _
    $region19: #{tpu_custom_call.1} parent=1 // pred_check_branch
      %22 = sbr.rel (0) target = $region21
    $region20: #{tpu_custom_call.1} parent=1 // pred_region
      _
    $region21: #{tpu_custom_call.1} parent=1 // pred_fallthru
      _
    // Predicated region
    $region22: #{tpu_custom_call.1} parent=1 // pred_check
      _
    $region23: #{tpu_custom_call.1} parent=1 // pred_check_branch
      %24 = sbr.rel (0) target = $region25
    $region24: #{tpu_custom_call.1} parent=1 // pred_region
      _
    $region25: #{tpu_custom_call.1} parent=1 // pred_fallthru
      _
    // Predicated region
    $region26: #{tpu_custom_call.1} parent=1 // pred_check
      _
    $region27: #{tpu_custom_call.1} parent=1 // pred_check_branch
      %26 = sbr.rel (0) target = $region29
    $region28: #{tpu_custom_call.1} parent=1 // pred_region
      _
    $region29: #{tpu_custom_call.1} parent=1 // pred_fallthru
      _
    %v27 = vld [vmem:[%s0] sm:$0xff]
    %v28 = vld [vmem:[%s1] sm:$0xff]
    %v29 = vld [vmem:[%s1 + $0x8] sm:$0xff]
    %v30 = vld [vmem:[%s2] sm:$0x1]
    %v32 = vlaneseq
    %v33 = vshrl.u32 %v32, 7
    %v34 = vsub.s32 0, %v33
    %v35 = vrot.slane %v30, %v34
    %vm37 = vcmask 130048
    %v39 = vsel %vm37, %v27, 0
    %41 = vmatprep.subr.mxu0 0.0
    %42 = vmatpush1.msra.mxu0 %v28
    %43 = vmatprep.subr.mxu0 0.0
    %44 = vmatpush1.msra.mxu0 %v29
    %45 = vmatprep.subr.mxu0 0.0
    %46 = vmatpush1.msra.mxu0 0.0
    %47 = vmatprep.subr.mxu0 0.0
    %48 = vmatpush1.msra.mxu0 0.0
    %49 = vmatprep.subr.mxu0 0.0
    %50 = vmatpush1.msra.mxu0 0.0
    %51 = vmatprep.subr.mxu0 0.0
    %52 = vmatpush1.msra.mxu0 0.0
    %53 = vmatprep.subr.mxu0 0.0
    %54 = vmatpush1.msra.mxu0 0.0
    %55 = vmatprep.subr.mxu0 0.0
    %56 = vmatpush1.msra.mxu0 0.0
    %57 = vmatprep.subr.mxu0 0.0
    %58 = vmatpush1.msra.mxu0 0.0
    %59 = vmatprep.subr.mxu0 0.0
    %60 = vmatpush1.msra.mxu0 0.0
    %61 = vmatprep.subr.mxu0 0.0
    %62 = vmatpush1.msra.mxu0 0.0
    %63 = vmatprep.subr.mxu0 0.0
    %64 = vmatpush1.msra.mxu0 0.0
    %65 = vmatprep.subr.mxu0 0.0
    %66 = vmatpush1.msra.mxu0 0.0
    %67 = vmatprep.subr.mxu0 0.0
    %68 = vmatpush1.msra.mxu0 0.0
    %69 = vmatprep.subr.mxu0 0.0
    %70 = vmatpush1.msra.mxu0 0.0
    %71 = vmatprep.subr.mxu0 0.0
    %72 = vmatpush1.msra.mxu0 0.0
    %73 = vmatprep.subr.mxu0 0.0
    %74 = vmatpush1.msra.mxu0 0.0
    %75 = vmatprep.subr.mxu0 0.0
    %76 = vmatpush1.msra.mxu0 0.0
    %77 = vmatprep.subr.mxu0 0.0
    %78 = vmatpush1.msra.mxu0 0.0
    %79 = vmatprep.subr.mxu0 0.0
    %80 = vmatpush1.msra.mxu0 0.0
    %81 = vmatprep.subr.mxu0 0.0
    %82 = vmatpush1.msra.mxu0 0.0
    %83 = vmatprep.subr.mxu0 0.0
    %84 = vmatpush1.msra.mxu0 0.0
    %85 = vmatprep.subr.mxu0 0.0
    %86 = vmatpush1.msra.mxu0 0.0
    %87 = vmatprep.subr.mxu0 0.0
    %88 = vmatpush1.msra.mxu0 0.0
    %89 = vmatprep.subr.mxu0 0.0
    %90 = vmatpush1.msra.mxu0 0.0
    %91 = vmatprep.subr.mxu0 0.0
    %92 = vmatpush1.msra.mxu0 0.0
    %93 = vmatprep.subr.mxu0 0.0
    %94 = vmatpush1.msra.mxu0 0.0
    %95 = vmatprep.subr.mxu0 0.0
    %96 = vmatpush1.msra.mxu0 0.0
    %97 = vmatprep.subr.mxu0 0.0
    %98 = vmatpush1.msra.mxu0 0.0
    %99 = vmatprep.subr.mxu0 0.0
    %100 = vmatpush1.msra.mxu0 0.0
    %101 = vmatprep.subr.mxu0 0.0
    %102 = vmatpush1.msra.mxu0 0.0
    %103 = vmatprep.subr.mxu0 0.0
    %104 = vmatpush1.msra.mxu0 0.0
    %105 = vmatprep.mubr.f32.mxu0 0.0
    %106 = vmatmul.mubr.f32.gmra.mrb[0].mxu0 %v39
    %v107 = vpop.f32.mrb[0].mxu0
    %v108 = vadd.f32 %v35, %v107
    %v109 = vpop.f32.mrb[0].mxu0
    %110 = vdwg.mxu0
    %v111 = vmax.f32 %v108, 0.0
    %v112 = vld [vmem:[%s3] sm:$0xff]
    %v113 = vld [vmem:[%s3 + $0x8] sm:$0xff]
    %v114 = vld [vmem:[%s3 + $0x10] sm:$0xff]
    %v115 = vld [vmem:[%s3 + $0x18] sm:$0xff]
    %v116 = vld [vmem:[%s3 + $0x20] sm:$0xff]
    %v117 = vld [vmem:[%s3 + $0x28] sm:$0xff]
    %v118 = vld [vmem:[%s3 + $0x30] sm:$0xff]
    %v119 = vld [vmem:[%s3 + $0x38] sm:$0xff]
    %v120 = vld [vmem:[%s3 + $0x40] sm:$0xff]
    %v121 = vld [vmem:[%s3 + $0x48] sm:$0xff]
    %v122 = vld [vmem:[%s3 + $0x50] sm:$0xff]
    %v123 = vld [vmem:[%s3 + $0x58] sm:$0xff]
    %v124 = vld [vmem:[%s3 + $0x60] sm:$0xff]
    %v125 = vld [vmem:[%s3 + $0x68] sm:$0xff]
    %v126 = vld [vmem:[%s3 + $0x70] sm:$0xff]
    %v127 = vld [vmem:[%s3 + $0x78] sm:$0xff]
    %v128 = vld [vmem:[%s4] sm:$0x1]
    %v130 = vlaneseq
    %v131 = vshrl.u32 %v130, 7
    %v132 = vsub.s32 0, %v131
    %v133 = vrot.slane %v128, %v132
    %135 = vmatprep.subr.mxu0 0.0
    %136 = vmatpush1.msra.mxu0 %v112
    %137 = vmatprep.subr.mxu0 0.0
    %138 = vmatpush1.msra.mxu0 %v113
    %139 = vmatprep.subr.mxu0 0.0
    %140 = vmatpush1.msra.mxu0 %v114
    %141 = vmatprep.subr.mxu0 0.0
    %142 = vmatpush1.msra.mxu0 %v115
    %143 = vmatprep.subr.mxu0 0.0
    %144 = vmatpush1.msra.mxu0 %v116
    %145 = vmatprep.subr.mxu0 0.0
    %146 = vmatpush1.msra.mxu0 %v117
    %147 = vmatprep.subr.mxu0 0.0
    %148 = vmatpush1.msra.mxu0 %v118
    %149 = vmatprep.subr.mxu0 0.0
    %150 = vmatpush1.msra.mxu0 %v119
    %151 = vmatprep.subr.mxu0 0.0
    %152 = vmatpush1.msra.mxu0 %v120
    %153 = vmatprep.subr.mxu0 0.0
    %154 = vmatpush1.msra.mxu0 %v121
    %155 = vmatprep.subr.mxu0 0.0
    %156 = vmatpush1.msra.mxu0 %v122
    %157 = vmatprep.subr.mxu0 0.0
    %158 = vmatpush1.msra.mxu0 %v123
    %159 = vmatprep.subr.mxu0 0.0
    %160 = vmatpush1.msra.mxu0 %v124
    %161 = vmatprep.subr.mxu0 0.0
    %162 = vmatpush1.msra.mxu0 %v125
    %163 = vmatprep.subr.mxu0 0.0
    %164 = vmatpush1.msra.mxu0 %v126
    %165 = vmatprep.subr.mxu0 0.0
    %166 = vmatpush1.msra.mxu0 %v127
    %167 = vmatprep.subr.mxu0 0.0
    %168 = vmatpush1.msra.mxu0 0.0
    %169 = vmatprep.subr.mxu0 0.0
    %170 = vmatpush1.msra.mxu0 0.0
    %171 = vmatprep.subr.mxu0 0.0
    %172 = vmatpush1.msra.mxu0 0.0
    %173 = vmatprep.subr.mxu0 0.0
    %174 = vmatpush1.msra.mxu0 0.0
    %175 = vmatprep.subr.mxu0 0.0
    %176 = vmatpush1.msra.mxu0 0.0
    %177 = vmatprep.subr.mxu0 0.0
    %178 = vmatpush1.msra.mxu0 0.0
    %179 = vmatprep.subr.mxu0 0.0
    %180 = vmatpush1.msra.mxu0 0.0
    %181 = vmatprep.subr.mxu0 0.0
    %182 = vmatpush1.msra.mxu0 0.0
    %183 = vmatprep.subr.mxu0 0.0
    %184 = vmatpush1.msra.mxu0 0.0
    %185 = vmatprep.subr.mxu0 0.0
    %186 = vmatpush1.msra.mxu0 0.0
    %187 = vmatprep.subr.mxu0 0.0
    %188 = vmatpush1.msra.mxu0 0.0
    %189 = vmatprep.subr.mxu0 0.0
    %190 = vmatpush1.msra.mxu0 0.0
    %191 = vmatprep.subr.mxu0 0.0
    %192 = vmatpush1.msra.mxu0 0.0
    %193 = vmatprep.subr.mxu0 0.0
    %194 = vmatpush1.msra.mxu0 0.0
    %195 = vmatprep.subr.mxu0 0.0
    %196 = vmatpush1.msra.mxu0 0.0
    %197 = vmatprep.subr.mxu0 0.0
    %198 = vmatpush1.msra.mxu0 0.0
    %199 = vmatprep.mubr.f32.mxu0 0.0
    %200 = vmatmul.mubr.f32.gmra.mrb[0].mxu0 %v111
    %v201 = vpop.f32.mrb[0].mxu0
    %v202 = vadd.f32 %v133, %v201
    %v203 = vpop.f32.mrb[0].mxu0
    %204 = vdwg.mxu0
    %v205 = vmax.f32 %v202, 0.0
    %v206 = vld [vmem:[%s5] sm:$0xff]
    %v207 = vld [vmem:[%s5 + $0x8] sm:$0xff]
    %v208 = vld [vmem:[%s5 + $0x10] sm:$0xff]
    %v209 = vld [vmem:[%s5 + $0x18] sm:$0xff]
    %v210 = vld [vmem:[%s5 + $0x20] sm:$0xff]
    %v211 = vld [vmem:[%s5 + $0x28] sm:$0xff]
    %v212 = vld [vmem:[%s5 + $0x30] sm:$0xff]
    %v213 = vld [vmem:[%s5 + $0x38] sm:$0xff]
    %v214 = vld [vmem:[%s6] sm:$0x1]
    %v216 = vlaneseq
    %v217 = vshrl.u32 %v216, 7
    %v218 = vsub.s32 0, %v217
    %v219 = vrot.slane %v214, %v218
    %vm221 = vcmask 523264
    %v223 = vsel %vm221, %v205, 0
    %225 = vmatprep.subr.mxu0 0.0
    %226 = vmatpush1.msra.mxu0 %v206
    %227 = vmatprep.subr.mxu0 0.0
    %228 = vmatpush1.msra.mxu0 %v207
    %229 = vmatprep.subr.mxu0 0.0
    %230 = vmatpush1.msra.mxu0 %v208
    %231 = vmatprep.subr.mxu0 0.0
    %232 = vmatpush1.msra.mxu0 %v209
    %233 = vmatprep.subr.mxu0 0.0
    %234 = vmatpush1.msra.mxu0 %v210
    %235 = vmatprep.subr.mxu0 0.0
    %236 = vmatpush1.msra.mxu0 %v211
    %237 = vmatprep.subr.mxu0 0.0
    %238 = vmatpush1.msra.mxu0 %v212
    %239 = vmatprep.subr.mxu0 0.0
    %240 = vmatpush1.msra.mxu0 %v213
    %241 = vmatprep.subr.mxu0 0.0
    %242 = vmatpush1.msra.mxu0 0.0
    %243 = vmatprep.subr.mxu0 0.0
    %244 = vmatpush1.msra.mxu0 0.0
    %245 = vmatprep.subr.mxu0 0.0
    %246 = vmatpush1.msra.mxu0 0.0
    %247 = vmatprep.subr.mxu0 0.0
    %248 = vmatpush1.msra.mxu0 0.0
    %249 = vmatprep.subr.mxu0 0.0
    %250 = vmatpush1.msra.mxu0 0.0
    %251 = vmatprep.subr.mxu0 0.0
    %252 = vmatpush1.msra.mxu0 0.0
    %253 = vmatprep.subr.mxu0 0.0
    %254 = vmatpush1.msra.mxu0 0.0
    %255 = vmatprep.subr.mxu0 0.0
    %256 = vmatpush1.msra.mxu0 0.0
    %257 = vmatprep.subr.mxu0 0.0
    %258 = vmatpush1.msra.mxu0 0.0
    %259 = vmatprep.subr.mxu0 0.0
    %260 = vmatpush1.msra.mxu0 0.0
    %261 = vmatprep.subr.mxu0 0.0
    %262 = vmatpush1.msra.mxu0 0.0
    %263 = vmatprep.subr.mxu0 0.0
    %264 = vmatpush1.msra.mxu0 0.0
    %265 = vmatprep.subr.mxu0 0.0
    %266 = vmatpush1.msra.mxu0 0.0
    %267 = vmatprep.subr.mxu0 0.0
    %268 = vmatpush1.msra.mxu0 0.0
    %269 = vmatprep.subr.mxu0 0.0
    %270 = vmatpush1.msra.mxu0 0.0
    %271 = vmatprep.subr.mxu0 0.0
    %272 = vmatpush1.msra.mxu0 0.0
    %273 = vmatprep.subr.mxu0 0.0
    %274 = vmatpush1.msra.mxu0 0.0
    %275 = vmatprep.subr.mxu0 0.0
    %276 = vmatpush1.msra.mxu0 0.0
    %277 = vmatprep.subr.mxu0 0.0
    %278 = vmatpush1.msra.mxu0 0.0
    %279 = vmatprep.subr.mxu0 0.0
    %280 = vmatpush1.msra.mxu0 0.0
    %281 = vmatprep.subr.mxu0 0.0
    %282 = vmatpush1.msra.mxu0 0.0
    %283 = vmatprep.subr.mxu0 0.0
    %284 = vmatpush1.msra.mxu0 0.0
    %285 = vmatprep.subr.mxu0 0.0
    %286 = vmatpush1.msra.mxu0 0.0
    %287 = vmatprep.subr.mxu0 0.0
    %288 = vmatpush1.msra.mxu0 0.0
    %289 = vmatprep.mubr.f32.mxu0 0.0
    %290 = vmatmul.mubr.f32.gmra.mrb[0].mxu0 %v223
    %v291 = vpop.f32.mrb[0].mxu0
    %v292 = vadd.f32 %v219, %v291
    %v293 = vpop.f32.mrb[0].mxu0
    %294 = vdwg.mxu0
    %295 = vst [vmem:[#allocation2] sm:$0xff] %v292
    // Predicated region
    $region30: #{tpu_custom_call.1} parent=1 // pred_check
      _
    $region31: #{tpu_custom_call.1} parent=1 // pred_check_branch
      %297 = sbr.rel (0) target = $region33
    $region32: #{tpu_custom_call.1} parent=1 // pred_region
      %s299 = ssub.s32 128, 128
      %300 = vsyncadd [#allocation3], %s299
      %s302 = sshll.u32 [#allocation2], 4
      %s303 = int_to_ptr.vmem [resolvable:$true] %s302
      %305 = dma.vmem_to_hbm [thread:$0]  %s303, 128, %s7, [#allocation3]
    $region33: #{tpu_custom_call.1} parent=1 // pred_fallthru
      _
    // Predicated region
    $region34: #{tpu_custom_call.1} parent=1 // pred_check
      _
    $region35: #{tpu_custom_call.1} parent=1 // pred_check_branch
      %307 = sbr.rel (0) target = $region37
    $region36: #{tpu_custom_call.1} parent=1 // pred_region
      %308 = dma.done [#allocation3], 128
    $region37: #{tpu_custom_call.1} parent=1 // pred_fallthru
      _
    %309 = vsyncpa [#allocation3], 1

</llo_original>
